<compile_context>
chip_gen: v7x
topology: tpu7x:2x2x1
jax: 0.10.0
libtpu: 0.0.40
codegen_flags: <defaults>
</compile_context>

<pallas_src>
import functools

import jax
import jax.numpy as jnp
from jax.experimental import pallas as pl
from jax.experimental.pallas import tpu as pltpu

# TODO(synk): the dinov2 torch.hub backbone (forward_features /
# get_intermediate_layers) is a pretrained external ViT with no clean in-script
# Pallas equivalent; its outputs (cls_token, patch_tokens) are synthesized
# deterministically in __main__ and fed to the fused head kernel.

LANE = 128
SUBLANE = 8


def _round_up(x, m):
    return (x + m - 1) // m * m


def _vmem_capacity_bytes():
    """Physical VMEM bytes for this generation (conservative fallback: v7x)."""
    try:
        info = pltpu.get_tpu_info()
        cap = getattr(info, "vmem_capacity_bytes", None)
        if cap:
            return int(cap)
    except Exception:
        pass
    return 64 * 1024 * 1024


def _head_kernel(cls_ref, patch_ref, w1c_ref, w1p_ref, b1_ref, *rest,
                 n_tokens, block_n, stacked):
    """Grid axes: (batch tile 'parallel', token tile 'arbitrary' reduction)."""
    if stacked:
        w2_ref, b2_ref, out_ref, pooled_acc = rest
    else:
        out_ref, pooled_acc = rest
        w2_ref = b2_ref = None

    n = pl.program_id(1)

    @pl.when(n == 0)
    def _():
        pooled_acc[...] = jnp.zeros_like(pooled_acc)

    # Accumulate the token sum in f32 (the 1/N of the mean is folded into w1p
    # on the host, so the kernel only sums).
    x = patch_ref[...].astype(jnp.float32)                      # [tb, tn, D]
    if n_tokens % block_n != 0:
        # Ragged tail tile: zero the tokens past the real sequence length.
        tok = jax.lax.broadcasted_iota(jnp.int32, x.shape[1:], 0)   # [tn, D]
        valid = (tok < (n_tokens - n * block_n))[None]              # [1, tn, D]
        x = jnp.where(valid, x, 0.0)
    pooled_acc[...] += jnp.sum(x, axis=1)

    @pl.when(n == pl.num_programs(1) - 1)
    def _():
        # cat([cls, mean]) @ W1  ==  cls @ W1[:D] + mean @ W1[D:]
        # bf16 x bf16 MXU dots, f32 accumulation.
        cls_bf = cls_ref[...].astype(jnp.bfloat16)
        pooled_bf = pooled_acc[...].astype(jnp.bfloat16)
        h = (jnp.dot(cls_bf, w1c_ref[...], preferred_element_type=jnp.float32)
             + jnp.dot(pooled_bf, w1p_ref[...], preferred_element_type=jnp.float32)
             + b1_ref[...])                                     # [tb, H1p]
        if stacked:                                             # stacked_layers == 2
            h = jnp.maximum(h, 0.0).astype(jnp.bfloat16)        # F.relu
            h = (jnp.dot(h, w2_ref[...], preferred_element_type=jnp.float32)
                 + b2_ref[...])                                 # [tb, Op]
        out_ref[...] = h.astype(out_ref.dtype)


def dino_classifier_head(cls_tok, patch_tok, params, *, stacked_layers,
                         block_b=None, block_n=None):
    """Classifier head on top of (synthetic) DINOv2 features.

    cls_tok:   [B, D]
    patch_tok: [B, N, D]
    params:    dict with w1 [(1+layers)*D, H1], b1 [1, H1], w2 [H1, 2], b2 [1, 2]
    """
    B, D = cls_tok.shape
    _, N, _ = patch_tok.shape
    in_bytes = jnp.dtype(patch_tok.dtype).itemsize
    stacked = stacked_layers == 2

    w1, b1 = params["w1"], params["b1"]
    H1 = w1.shape[1]
    # Split linear_head weight (avoids an in-kernel concat) and fold the 1/N of
    # the mean into the patch-side weight so the kernel accumulates a plain sum.
    w1c = w1[:D]
    w1p = w1[D:] * (1.0 / N)

    # Pad head widths to lane-dense multiples of 128 (unmasked stores, clean
    # MXU N dims).  Padded columns/bias entries are zero, so the real output
    # columns are unaffected and simply sliced out afterwards.
    H1p = _round_up(H1, LANE)
    w1c = jnp.pad(w1c, ((0, 0), (0, H1p - H1))).astype(jnp.bfloat16)
    w1p = jnp.pad(w1p, ((0, 0), (0, H1p - H1))).astype(jnp.bfloat16)
    b1 = jnp.pad(b1, ((0, 0), (0, H1p - H1))).astype(jnp.float32)

    if stacked:
        w2, b2 = params["w2"], params["b2"]
        out_dim = w2.shape[1]
        Op = _round_up(out_dim, LANE)
        w2 = jnp.pad(w2, ((0, H1p - H1), (0, Op - out_dim))).astype(jnp.bfloat16)
        b2 = jnp.pad(b2, ((0, 0), (0, Op - out_dim))).astype(jnp.float32)
    else:
        out_dim = H1
        Op = H1p

    # ---- Tile selection from a per-generation VMEM byte budget --------------
    cap = _vmem_capacity_bytes()
    budget = int(cap * 0.70)              # headroom for Mosaic internal scratch

    if block_b is None:
        if B <= SUBLANE:
            block_b = B                    # sublane rule: full-B tile
        else:
            # >=2 batch blocks so v7x's two TensorCores both get work.
            block_b = min(128, _round_up((B + 1) // 2, SUBLANE))
    if block_n is None:
        patch_budget = int(budget * 0.8)   # double-buffered patch stream
        max_bn = max(SUBLANE, patch_budget // (2 * block_b * D * in_bytes))
        if max_bn >= N:
            block_n = N
        else:
            block_n = max(SUBLANE, (max_bn // SUBLANE) * SUBLANE)

    grid = (pl.cdiv(B, block_b), pl.cdiv(N, block_n))

    cls_spec = pl.BlockSpec((block_b, D), lambda b, n: (b, 0))
    patch_spec = pl.BlockSpec((block_b, block_n, D), lambda b, n: (b, n, 0))
    # Constant block index -> weights/biases DMA'd once, resident across grid.
    resident = lambda arr: pl.BlockSpec(arr.shape, lambda b, n: (0, 0))
    out_spec = pl.BlockSpec((block_b, Op), lambda b, n: (b, 0))

    in_specs = [cls_spec, patch_spec, resident(w1c), resident(w1p), resident(b1)]
    args = [cls_tok, patch_tok, w1c, w1p, b1]
    if stacked:
        in_specs += [resident(w2), resident(b2)]
        args += [w2, b2]

    kernel = functools.partial(_head_kernel, n_tokens=N, block_n=block_n,
                               stacked=stacked)

    # Request only what we need (plus margin), never more than ~75% of physical.
    small = (w1c, w1p, b1) + ((w2, b2) if stacked else ())
    est = (2 * block_b * block_n * D * in_bytes                       # patch x2
           + 2 * block_b * D * jnp.dtype(cls_tok.dtype).itemsize      # cls   x2
           + 2 * block_b * Op * 4                                     # out   x2
           + 2 * sum(int(a.size) * jnp.dtype(a.dtype).itemsize for a in small)
           + block_b * D * 4)                                         # acc scratch
    vmem_limit = min(max(est + (4 << 20), 32 << 20), int(cap * 0.75))

    out_padded = pl.pallas_call(
        kernel,
        out_shape=jax.ShapeDtypeStruct((B, Op), jnp.float32),
        grid_spec=pltpu.PrefetchScalarGridSpec(
            num_scalar_prefetch=0,
            grid=grid,
            in_specs=in_specs,
            out_specs=out_spec,
            scratch_shapes=[pltpu.VMEM((block_b, D), jnp.float32)],
        ),
        compiler_params=pltpu.CompilerParams(
            dimension_semantics=("parallel", "arbitrary"),
            vmem_limit_bytes=vmem_limit,
        ),
    )(*args)

    return out_padded[:, :out_dim]


def init_params(key, *, layers, hidden_dim, stacked_layers):
    """Deterministic nn.Linear-style init (U(-1/sqrt(fan_in), 1/sqrt(fan_in)))."""
    in1 = (1 + layers) * hidden_dim
    h1 = 100 if stacked_layers == 2 else 2   # mode='small' head widths
    k1, k2, k3, k4 = jax.random.split(key, 4)
    bound1 = 1.0 / jnp.sqrt(in1)
    w1 = jax.random.uniform(k1, (in1, h1), jnp.float32, -bound1, bound1)
    b1 = jax.random.uniform(k2, (1, h1), jnp.float32, -bound1, bound1)
    bound2 = 1.0 / jnp.sqrt(h1)
    w2 = jax.random.uniform(k3, (h1, 2), jnp.float32, -bound2, bound2)
    b2 = jax.random.uniform(k4, (1, 2), jnp.float32, -bound2, bound2)
    return {"w1": w1, "b1": b1, "w2": w2, "b2": b2}


def reference_head(cls_tok, patch_tok, params, *, stacked_layers):
    """Plain-JAX f32 reference mirroring the PyTorch forward exactly."""
    pooled = jnp.mean(patch_tok, axis=1)
    linear_input = jnp.concatenate([cls_tok, pooled], axis=1)
    x = linear_input @ params["w1"] + params["b1"]
    if stacked_layers == 2:
        x = jnp.maximum(x, 0.0) @ params["w2"] + params["b2"]
    return x


if __name__ == "__main__":
    # Small, module-consistent shapes:
    #   batch B=2, patch tokens N=10 (deliberately NOT a multiple of the token
    #   tile, to exercise the tail mask), hidden D=32 (stand-in for ViT-S/14's
    #   384), layers=1; both stacked_layers variants exercised.
    B, N, D = 2, 10, 32
    LAYERS = 1

    key = jax.random.PRNGKey(0)
    k_cls, k_patch, k_params = jax.random.split(key, 3)

    # Synthetic stand-ins for dinov2 forward_features outputs.
    cls_tok = jax.random.normal(k_cls, (B, D), jnp.float32)         # x_norm_clstoken
    patch_tok = jax.random.normal(k_patch, (B, N, D), jnp.float32)  # x_norm_patchtokens

    # (stacked_layers, explicit token tile): block_n=8 forces a 2-step masked
    # reduction; None takes the VMEM-budget default (single full tile here).
    for stacked, bn in ((2, 8), (1, None)):
        params = init_params(k_params, layers=LAYERS, hidden_dim=D,
                             stacked_layers=stacked)
        out = dino_classifier_head(cls_tok, patch_tok, params,
                                   stacked_layers=stacked, block_n=bn)
        out = jax.block_until_ready(out)
        ref = reference_head(cls_tok, patch_tok, params, stacked_layers=stacked)
        assert out.shape == (B, 2), (stacked, out.shape)
        assert jnp.allclose(out, ref, rtol=2e-2, atol=2e-2), (stacked, out, ref)

    print("KERNEL_OK")
</pallas_src>

<mosaic_0001>
module attributes {stable_mosaic.version = 11 : i64} {
  func.func @_head_kernel(%arg0: i32, %arg1: i32, %arg2: memref<2x32xf32, #tpu.memory_space<vmem>>, %arg3: memref<2x8x32xf32, #tpu.memory_space<vmem>>, %arg4: memref<32x128xbf16, #tpu.memory_space<vmem>>, %arg5: memref<32x128xbf16, #tpu.memory_space<vmem>>, %arg6: memref<1x128xf32, #tpu.memory_space<vmem>>, %arg7: memref<128x128xbf16, #tpu.memory_space<vmem>>, %arg8: memref<1x128xf32, #tpu.memory_space<vmem>>, %arg9: memref<2x128xf32, #tpu.memory_space<vmem>>, %arg10: memref<2x32xf32, #tpu.memory_space<vmem>>) attributes {dimension_semantics = [#tpu.dimension_semantics<parallel>, #tpu.dimension_semantics<arbitrary>], iteration_bounds = array<i64: 1, 2>, scalar_prefetch = 0 : i64, scratch_operands = 1 : i64, tpu.core_type = #tpu.core_type<tc>, window_params = [{transform_indices = @transform_0, window_bounds = array<i64: 2, 32>}, {transform_indices = @transform_1, window_bounds = array<i64: 2, 8, 32>}, {pipeline_mode = #tpu.pipeline_mode<synchronous>, transform_indices = @transform_2, window_bounds = array<i64: 32, 128>}, {pipeline_mode = #tpu.pipeline_mode<synchronous>, transform_indices = @transform_3, window_bounds = array<i64: 32, 128>}, {pipeline_mode = #tpu.pipeline_mode<synchronous>, transform_indices = @transform_4, window_bounds = array<i64: 1, 128>}, {pipeline_mode = #tpu.pipeline_mode<synchronous>, transform_indices = @transform_5, window_bounds = array<i64: 128, 128>}, {pipeline_mode = #tpu.pipeline_mode<synchronous>, transform_indices = @transform_6, window_bounds = array<i64: 1, 128>}, {transform_indices = @transform_7, window_bounds = array<i64: 2, 128>}]} {
    %c0_i32 = arith.constant 0 : i32
    %0 = arith.cmpi eq, %arg1, %c0_i32 : i32
    %1 = arith.extui %0 : i1 to i32
    %c0_i32_0 = arith.constant 0 : i32
    %2 = arith.cmpi ne, %1, %c0_i32_0 : i32
    scf.if %2 {
      %cst_9 = arith.constant 0.000000e+00 : f32
      %21 = vector.broadcast %cst_9 : f32 to vector<2x32xf32>
      %c0_10 = arith.constant 0 : index
      %c0_11 = arith.constant 0 : index
      %22 = vector.load %arg10[%c0_10, %c0_11] : memref<2x32xf32, #tpu.memory_space<vmem>>, vector<2x32xf32>
      tpu.vector_store %arg10[%c0_10, %c0_11], %21 {strides = array<i32>} : memref<2x32xf32, #tpu.memory_space<vmem>>, vector<2x32xf32>,
    } else {
    }
    %c0 = arith.constant 0 : index
    %c0_1 = arith.constant 0 : index
    %c0_2 = arith.constant 0 : index
    %3 = vector.load %arg3[%c0, %c0_1, %c0_2] : memref<2x8x32xf32, #tpu.memory_space<vmem>>, vector<2x8x32xf32>
    %4 = tpu.iota {dimensions = array<i32: 0>} : vector<8x32xi32>
    %c8_i32 = arith.constant 8 : i32
    %5 = arith.muli %arg1, %c8_i32 : i32
    %c10_i32 = arith.constant 10 : i32
    %6 = arith.subi %c10_i32, %5 : i32
    %7 = vector.broadcast %6 : i32 to vector<8x32xi32>
    %8 = arith.cmpi slt, %4, %7 : vector<8x32xi32>
    %9 = vector.shape_cast %8 : vector<8x32xi1> to vector<1x8x32xi1>
    %cst = arith.constant 0.000000e+00 : f32
    %10 = vector.shape_cast %9 : vector<1x8x32xi1> to vector<1x8x32xi1>
    %11 = vector.broadcast %10 : vector<1x8x32xi1> to vector<2x8x32xi1>
    %12 = vector.broadcast %cst : f32 to vector<2x8x32xf32>
    %13 = arith.select %11, %3, %12 : vector<2x8x32xi1>, vector<2x8x32xf32>
    %c0_3 = arith.constant 0 : index
    %c0_4 = arith.constant 0 : index
    %14 = vector.load %arg10[%c0_3, %c0_4] : memref<2x32xf32, #tpu.memory_space<vmem>>, vector<2x32xf32>
    %cst_5 = arith.constant dense<0.000000e+00> : vector<2x32xf32>
    %15 = vector.multi_reduction <add>, %13, %cst_5 [1] : vector<2x8x32xf32> to vector<2x32xf32>
    %16 = arith.addf %14, %15 : vector<2x32xf32>
    %c0_6 = arith.constant 0 : index
    %c0_7 = arith.constant 0 : index
    %17 = vector.load %arg10[%c0_6, %c0_7] : memref<2x32xf32, #tpu.memory_space<vmem>>, vector<2x32xf32>
    tpu.vector_store %arg10[%c0_6, %c0_7], %16 {strides = array<i32>} : memref<2x32xf32, #tpu.memory_space<vmem>>, vector<2x32xf32>,
    %c1_i32 = arith.constant 1 : i32
    %18 = arith.cmpi eq, %arg1, %c1_i32 : i32
    %19 = arith.extui %18 : i1 to i32
    %c0_i32_8 = arith.constant 0 : i32
    %20 = arith.cmpi ne, %19, %c0_i32_8 : i32
    scf.if %20 {
      %c0_9 = arith.constant 0 : index
      %c0_10 = arith.constant 0 : index
      %21 = vector.load %arg2[%c0_9, %c0_10] : memref<2x32xf32, #tpu.memory_space<vmem>>, vector<2x32xf32>
      %22 = arith.truncf %21 : vector<2x32xf32> to vector<2x32xbf16>
      %c0_11 = arith.constant 0 : index
      %c0_12 = arith.constant 0 : index
      %23 = vector.load %arg10[%c0_11, %c0_12] : memref<2x32xf32, #tpu.memory_space<vmem>>, vector<2x32xf32>
      %24 = arith.truncf %23 : vector<2x32xf32> to vector<2x32xbf16>
      %c0_13 = arith.constant 0 : index
      %c0_14 = arith.constant 0 : index
      %25 = vector.load %arg4[%c0_13, %c0_14] : memref<32x128xbf16, #tpu.memory_space<vmem>>, vector<32x128xbf16>
      %cst_15 = arith.constant dense<0.000000e+00> : vector<2x128xf32>
      %26 = tpu.matmul %22, %25, %cst_15 {dimension_numbers = #tpu.dot_dimension_numbers<[1], [0], [0], [1], [0, 0, 1, 1], [], []>} : vector<2x32xbf16>, vector<32x128xbf16>, vector<2x128xf32> -> vector<2x128xf32>
      %c0_16 = arith.constant 0 : index
      %c0_17 = arith.constant 0 : index
      %27 = vector.load %arg5[%c0_16, %c0_17] : memref<32x128xbf16, #tpu.memory_space<vmem>>, vector<32x128xbf16>
      %cst_18 = arith.constant dense<0.000000e+00> : vector<2x128xf32>
      %28 = tpu.matmul %24, %27, %cst_18 {dimension_numbers = #tpu.dot_dimension_numbers<[1], [0], [0], [1], [0, 0, 1, 1], [], []>} : vector<2x32xbf16>, vector<32x128xbf16>, vector<2x128xf32> -> vector<2x128xf32>
      %29 = arith.addf %26, %28 : vector<2x128xf32>
      %c0_19 = arith.constant 0 : index
      %c0_20 = arith.constant 0 : index
      %30 = vector.load %arg6[%c0_19, %c0_20] : memref<1x128xf32, #tpu.memory_space<vmem>>, vector<1x128xf32>
      %31 = vector.broadcast %30 : vector<1x128xf32> to vector<2x128xf32>
      %32 = arith.addf %29, %31 : vector<2x128xf32>
      %cst_21 = arith.constant 0.000000e+00 : f32
      %33 = vector.broadcast %cst_21 : f32 to vector<2x128xf32>
      %34 = arith.maximumf %32, %33 : vector<2x128xf32>
      %35 = arith.truncf %34 : vector<2x128xf32> to vector<2x128xbf16>
      %c0_22 = arith.constant 0 : index
      %c0_23 = arith.constant 0 : index
      %36 = vector.load %arg7[%c0_22, %c0_23] : memref<128x128xbf16, #tpu.memory_space<vmem>>, vector<128x128xbf16>
      %cst_24 = arith.constant dense<0.000000e+00> : vector<2x128xf32>
      %37 = tpu.matmul %35, %36, %cst_24 {dimension_numbers = #tpu.dot_dimension_numbers<[1], [0], [0], [1], [0, 0, 1, 1], [], []>} : vector<2x128xbf16>, vector<128x128xbf16>, vector<2x128xf32> -> vector<2x128xf32>
      %c0_25 = arith.constant 0 : index
      %c0_26 = arith.constant 0 : index
      %38 = vector.load %arg8[%c0_25, %c0_26] : memref<1x128xf32, #tpu.memory_space<vmem>>, vector<1x128xf32>
      %39 = vector.broadcast %38 : vector<1x128xf32> to vector<2x128xf32>
      %40 = arith.addf %37, %39 : vector<2x128xf32>
      %c0_27 = arith.constant 0 : index
      %c0_28 = arith.constant 0 : index
      %41 = vector.load %arg9[%c0_27, %c0_28] : memref<2x128xf32, #tpu.memory_space<vmem>>, vector<2x128xf32>
      tpu.vector_store %arg9[%c0_27, %c0_28], %40 {strides = array<i32>} : memref<2x128xf32, #tpu.memory_space<vmem>>, vector<2x128xf32>,
    } else {
    }
    return
  }
  func.func @transform_0(%arg0: i32, %arg1: i32) -> (i32, i32) {
    %c0_i32 = arith.constant 0 : i32
    %c0_i32_0 = arith.constant 0 : i32
    return %arg0, %c0_i32 : i32, i32
  }
  func.func @transform_1(%arg0: i32, %arg1: i32) -> (i32, i32, i32) {
    %c0_i32 = arith.constant 0 : i32
    %c0_i32_0 = arith.constant 0 : i32
    return %arg0, %arg1, %c0_i32 : i32, i32, i32
  }
  func.func @transform_2(%arg0: i32, %arg1: i32) -> (i32, i32) {
    %c0_i32 = arith.constant 0 : i32
    %c0_i32_0 = arith.constant 0 : i32
    %c0_i32_1 = arith.constant 0 : i32
    return %c0_i32, %c0_i32_0 : i32, i32
  }
  func.func @transform_3(%arg0: i32, %arg1: i32) -> (i32, i32) {
    %c0_i32 = arith.constant 0 : i32
    %c0_i32_0 = arith.constant 0 : i32
    %c0_i32_1 = arith.constant 0 : i32
    return %c0_i32, %c0_i32_0 : i32, i32
  }
  func.func @transform_4(%arg0: i32, %arg1: i32) -> (i32, i32) {
    %c0_i32 = arith.constant 0 : i32
    %c0_i32_0 = arith.constant 0 : i32
    %c0_i32_1 = arith.constant 0 : i32
    return %c0_i32, %c0_i32_0 : i32, i32
  }
  func.func @transform_5(%arg0: i32, %arg1: i32) -> (i32, i32) {
    %c0_i32 = arith.constant 0 : i32
    %c0_i32_0 = arith.constant 0 : i32
    %c0_i32_1 = arith.constant 0 : i32
    return %c0_i32, %c0_i32_0 : i32, i32
  }
  func.func @transform_6(%arg0: i32, %arg1: i32) -> (i32, i32) {
    %c0_i32 = arith.constant 0 : i32
    %c0_i32_0 = arith.constant 0 : i32
    %c0_i32_1 = arith.constant 0 : i32
    return %c0_i32, %c0_i32_0 : i32, i32
  }
  func.func @transform_7(%arg0: i32, %arg1: i32) -> (i32, i32) {
    %c0_i32 = arith.constant 0 : i32
    %c0_i32_0 = arith.constant 0 : i32
    return %arg0, %c0_i32 : i32, i32
  }
}

</mosaic_0001>

<llo_original>
// kernel: tpu_custom_call.1
$region0: #{tpu_custom_call.1}
  #allocation0 [shape = 'u32[]', space=smem, size = 0x4, offset = 0x4, fixed_abs, tag = 'smem constant byte address 0x4 - core index']
  #allocation1 [shape = 'u32[144,128]{1,0:T(1,128)}', space=vmem, size = 0x12000, scoped, tag = 'internal scratch']
  #allocation2 [shape = 'f32[2,32]{1,0:T(2,128)}', space=vmem, size = 0x400, scoped, tag = 'scratch operand']
  %s0 = inlined_call_operand.vmem [shape: f32[2,32], index: 0, kind: input, shape index: {}]
  %s1 = inlined_call_operand.vmem [shape: f32[2,10,32], index: 1, kind: input, shape index: {}]
  %s2 = inlined_call_operand.hbm [shape: bf16[32,128], index: 2, kind: input, shape index: {}]
  %s3 = inlined_call_operand.hbm [shape: bf16[32,128], index: 3, kind: input, shape index: {}]
  %s4 = inlined_call_operand.vmem [shape: f32[1,128], index: 4, kind: input, shape index: {}]
  %s5 = inlined_call_operand.vmem [shape: bf16[128,128], index: 5, kind: input, shape index: {}]
  %s6 = inlined_call_operand.vmem [shape: f32[1,128], index: 6, kind: input, shape index: {}]
  %s7 = inlined_call_operand.hbm [shape: f32[2,128], index: 7, kind: output, shape index: {}]
  %s8 = sld [smem:[#allocation0]]
  $region115: #{tpu_custom_call.1} parent=0
    _
  %s10 = ssub.s32 1, %s8
  %s11 = scalar_select 0, %s10, %s8
  $region1: #{tpu_custom_call.1} parent=0
    #allocation3 [shape = 'u8[16384]{0}', space=vmem, size = 0x4000, scoped, tag = 'input window, operand 1']
    #allocation4 [shape = 'u8[8192]{0}', space=vmem, size = 0x2000, scoped, tag = 'input window, operand 2, single buffered']
    #allocation5 [shape = 's32[2]{0}', space=sflag, size = 0x8, scoped, tag = 'scoped memory for tpu_custom_call.1']
    #allocation6 [shape = 's32[2]{0}', space=sflag, size = 0x8, scoped, tag = 'scoped memory for tpu_custom_call.1']
    #allocation7 [shape = 'u8[8192]{0}', space=vmem, size = 0x2000, scoped, tag = 'input window, operand 3, single buffered']
    #allocation8 [shape = 's32[1]{0}', space=sflag, size = 0x4, scoped, tag = 'scoped memory for tpu_custom_call.1']
    #allocation9 [shape = 'u8[1024]{0}', space=vmem, size = 0x400, scoped, tag = 'output window, operand 0, single buffered']
    %12 = vsyncpa [#allocation5], 0
    %13 = vsyncpa [#allocation8], 0
    %14 = vsyncpa [#allocation6], 0
    loop: start=0, step=1, limit=4
    $region2: #{tpu_custom_call.1} parent=1 // loop_pre_header
      _
    $region3: #{tpu_custom_call.1} parent=1 // loop_header
      %s16 = sphi 0, %s20
      %p17 = scmp.ge.s32.totalorder %s16, 4
      %s23 = sphi 0, %s35
      %s24 = sphi 0, %s31
      %s25 = sphi 0, %s23
      %s26 = sphi 0, %s24
      %s27 = sphi 0, %s25
      %s28 = sphi 0, %s26
      %s38 = sphi 0, %s40
      %s41 = sphi 0, %s38
      %s42 = sphi 0, %s41
      %s58 = sphi 0, %s42
      %s66 = sphi 0, %s68
      %s69 = sphi 0, %s66
      %s70 = sphi 0, %s69
      %s86 = sphi 0, %s70
      %s90 = sphi 0, %s90
      %s92 = sphi 0, %s90
      %s93 = sphi 0, %s92
      %s107 = sphi 0, %s93
      %s111 = sphi 0, %s111
      %s113 = sphi 0, %s111
      %s114 = sphi 0, %s113
      %s128 = sphi 0, %s114
      %s132 = sphi 0, %s132
      %s134 = sphi 0, %s132
      %s135 = sphi 0, %s134
      %s149 = sphi 0, %s135
      %s153 = sphi 0, %s153
      %s155 = sphi 0, %s153
      %s156 = sphi 0, %s155
      %s170 = sphi 0, %s156
      %s174 = sphi 0, %s174
      %s176 = sphi 0, %s174
      %s177 = sphi 0, %s176
      %s191 = sphi 0, %s177
      %s197 = sphi 0, %s199
      %s200 = sphi 0, %s197
      %s201 = sphi 0, %s200
      %s217 = sphi 0, %s201
    $region4: #{tpu_custom_call.1} parent=1 // loop_header_branch
      %19 = sbr.rel (%p17) target = $region8
    $region5: #{tpu_custom_call.1} parent=1 // loop_body
      %s21 = ssub.s32 %s16, 1
      %s22 = ssub.s32 %s16, 2
      %s29 = sadd.s32 1, %s24
      %p30 = scmp.ge.s32.totalorder %s29, 2
      %s31 = scalar_select %p30, 0, %s29
      %s32 = sadd.s32 1, %s23
      %s33 = scalar_select %p30, %s32, %s23
      %p34 = scmp.ge.s32.totalorder %s33, 1
      %s35 = scalar_select %p34, 0, %s33
      %s36 = ssub.s32 %s23, %s35
      %p37 = scmp.eq.s32.totalorder %s36, 0
      %s39 = sadd.s32 %s38, 1
      %s40 = scalar_select %p37, %s38, %s39
      %p43 = pneg %p37
      %p44 = scmp.eq.s32.totalorder %s16, 1
      %p45 = por %p43, %p44
      %p46 = scmp.ne.s32.totalorder %s38, %s41
      %p47 = scmp.eq.s32.totalorder %s16, 0
      %p48 = por %p46, %p47
      %p49 = scmp.ne.s32.totalorder %s38, %s41
      %p50 = scmp.eq.s32.totalorder %s21, 1
      %p51 = por %p49, %p50
      %p52 = scmp.ne.s32.totalorder %s41, %s42
      %p53 = scmp.eq.s32.totalorder %s21, 0
      %p54 = por %p52, %p53
      %p55 = scmp.ne.s32.totalorder %s41, %s42
      %p56 = scmp.eq.s32.totalorder %s22, 1
      %p57 = por %p55, %p56
      %p59 = scmp.ne.s32.totalorder %s42, %s58
      %p60 = scmp.eq.s32.totalorder %s22, 0
      %p61 = por %p59, %p60
      %s62 = ssub.s32 %s23, %s35
      %s63 = ssub.s32 %s24, %s31
      %s64 = sor.u32 %s62, %s63
      %p65 = scmp.eq.s32.totalorder %s64, 0
      %s67 = sadd.s32 %s66, 1
      %s68 = scalar_select %p65, %s66, %s67
      %p71 = pneg %p65
      %p72 = scmp.eq.s32.totalorder %s16, 1
      %p73 = por %p71, %p72
      %p74 = scmp.ne.s32.totalorder %s66, %s69
      %p75 = scmp.eq.s32.totalorder %s16, 0
      %p76 = por %p74, %p75
      %p77 = scmp.ne.s32.totalorder %s66, %s69
      %p78 = scmp.eq.s32.totalorder %s21, 1
      %p79 = por %p77, %p78
      %p80 = scmp.ne.s32.totalorder %s69, %s70
      %p81 = scmp.eq.s32.totalorder %s21, 0
      %p82 = por %p80, %p81
      %p83 = scmp.ne.s32.totalorder %s69, %s70
      %p84 = scmp.eq.s32.totalorder %s22, 1
      %p85 = por %p83, %p84
      %p87 = scmp.ne.s32.totalorder %s70, %s86
      %p88 = scmp.eq.s32.totalorder %s22, 0
      %p89 = por %p87, %p88
      %s91 = sadd.s32 %s90, 1
      %p94 = scmp.eq.s32.totalorder %s16, 1
      %p95 = scmp.ne.s32.totalorder %s90, %s92
      %p96 = scmp.eq.s32.totalorder %s16, 0
      %p97 = por %p95, %p96
      %p98 = scmp.ne.s32.totalorder %s90, %s92
      %p99 = scmp.eq.s32.totalorder %s21, 1
      %p100 = por %p98, %p99
      %p101 = scmp.ne.s32.totalorder %s92, %s93
      %p102 = scmp.eq.s32.totalorder %s21, 0
      %p103 = por %p101, %p102
      %p104 = scmp.ne.s32.totalorder %s92, %s93
      %p105 = scmp.eq.s32.totalorder %s22, 1
      %p106 = por %p104, %p105
      %p108 = scmp.ne.s32.totalorder %s93, %s107
      %p109 = scmp.eq.s32.totalorder %s22, 0
      %p110 = por %p108, %p109
      %s112 = sadd.s32 %s111, 1
      %p115 = scmp.eq.s32.totalorder %s16, 1
      %p116 = scmp.ne.s32.totalorder %s111, %s113
      %p117 = scmp.eq.s32.totalorder %s16, 0
      %p118 = por %p116, %p117
      %p119 = scmp.ne.s32.totalorder %s111, %s113
      %p120 = scmp.eq.s32.totalorder %s21, 1
      %p121 = por %p119, %p120
      %p122 = scmp.ne.s32.totalorder %s113, %s114
      %p123 = scmp.eq.s32.totalorder %s21, 0
      %p124 = por %p122, %p123
      %p125 = scmp.ne.s32.totalorder %s113, %s114
      %p126 = scmp.eq.s32.totalorder %s22, 1
      %p127 = por %p125, %p126
      %p129 = scmp.ne.s32.totalorder %s114, %s128
      %p130 = scmp.eq.s32.totalorder %s22, 0
      %p131 = por %p129, %p130
      %s133 = sadd.s32 %s132, 1
      %p136 = scmp.eq.s32.totalorder %s16, 1
      %p137 = scmp.ne.s32.totalorder %s132, %s134
      %p138 = scmp.eq.s32.totalorder %s16, 0
      %p139 = por %p137, %p138
      %p140 = scmp.ne.s32.totalorder %s132, %s134
      %p141 = scmp.eq.s32.totalorder %s21, 1
      %p142 = por %p140, %p141
      %p143 = scmp.ne.s32.totalorder %s134, %s135
      %p144 = scmp.eq.s32.totalorder %s21, 0
      %p145 = por %p143, %p144
      %p146 = scmp.ne.s32.totalorder %s134, %s135
      %p147 = scmp.eq.s32.totalorder %s22, 1
      %p148 = por %p146, %p147
      %p150 = scmp.ne.s32.totalorder %s135, %s149
      %p151 = scmp.eq.s32.totalorder %s22, 0
      %p152 = por %p150, %p151
      %s154 = sadd.s32 %s153, 1
      %p157 = scmp.eq.s32.totalorder %s16, 1
      %p158 = scmp.ne.s32.totalorder %s153, %s155
      %p159 = scmp.eq.s32.totalorder %s16, 0
      %p160 = por %p158, %p159
      %p161 = scmp.ne.s32.totalorder %s153, %s155
      %p162 = scmp.eq.s32.totalorder %s21, 1
      %p163 = por %p161, %p162
      %p164 = scmp.ne.s32.totalorder %s155, %s156
      %p165 = scmp.eq.s32.totalorder %s21, 0
      %p166 = por %p164, %p165
      %p167 = scmp.ne.s32.totalorder %s155, %s156
      %p168 = scmp.eq.s32.totalorder %s22, 1
      %p169 = por %p167, %p168
      %p171 = scmp.ne.s32.totalorder %s156, %s170
      %p172 = scmp.eq.s32.totalorder %s22, 0
      %p173 = por %p171, %p172
      %s175 = sadd.s32 %s174, 1
      %p178 = scmp.eq.s32.totalorder %s16, 1
      %p179 = scmp.ne.s32.totalorder %s174, %s176
      %p180 = scmp.eq.s32.totalorder %s16, 0
      %p181 = por %p179, %p180
      %p182 = scmp.ne.s32.totalorder %s174, %s176
      %p183 = scmp.eq.s32.totalorder %s21, 1
      %p184 = por %p182, %p183
      %p185 = scmp.ne.s32.totalorder %s176, %s177
      %p186 = scmp.eq.s32.totalorder %s21, 0
      %p187 = por %p185, %p186
      %p188 = scmp.ne.s32.totalorder %s176, %s177
      %p189 = scmp.eq.s32.totalorder %s22, 1
      %p190 = por %p188, %p189
      %p192 = scmp.ne.s32.totalorder %s177, %s191
      %p193 = scmp.eq.s32.totalorder %s22, 0
      %p194 = por %p192, %p193
      %s195 = ssub.s32 %s23, %s35
      %p196 = scmp.eq.s32.totalorder %s195, 0
      %s198 = sadd.s32 %s197, 1
      %s199 = scalar_select %p196, %s197, %s198
      %p202 = pneg %p196
      %p203 = scmp.eq.s32.totalorder %s16, 1
      %p204 = por %p202, %p203
      %p205 = scmp.ne.s32.totalorder %s197, %s200
      %p206 = scmp.eq.s32.totalorder %s16, 0
      %p207 = por %p205, %p206
      %p208 = scmp.ne.s32.totalorder %s197, %s200
      %p209 = scmp.eq.s32.totalorder %s21, 1
      %p210 = por %p208, %p209
      %p211 = scmp.ne.s32.totalorder %s200, %s201
      %p212 = scmp.eq.s32.totalorder %s21, 0
      %p213 = por %p211, %p212
      %p214 = scmp.ne.s32.totalorder %s200, %s201
      %p215 = scmp.eq.s32.totalorder %s22, 1
      %p216 = por %p214, %p215
      %p218 = scmp.ne.s32.totalorder %s201, %s217
      %p219 = scmp.eq.s32.totalorder %s22, 0
      %p220 = por %p218, %p219
      %p221 = scmp.le.s32.totalorder 1, %s16
      %p222 = scmp.lt.s32.totalorder %s16, 3
      %p223 = pnand %p221, %p222
      %p224 = pneg %p223
      // Predicated region
      $region9: #{tpu_custom_call.1} parent=5 // pred_check
        _
      $region10: #{tpu_custom_call.1} parent=5 // pred_check_branch
        %226 = sbr.rel (%p223) target = $region12
      $region11: #{tpu_custom_call.1} parent=5 // pred_region
        %s227 = ssub.s32 %s16, 1
        // Predicated region
        $region13: #{tpu_custom_call.1} parent=11 // pred_check
          %p228 = pneg %p54
        $region14: #{tpu_custom_call.1} parent=11 // pred_check_branch
          %230 = sbr.rel (%p228) target = $region16
        $region15: #{tpu_custom_call.1} parent=11 // pred_region
          %p231 = scmp.lt.s32.totalorder %s25, 0
          %s232 = scalar_select %p231, %s25, 0
          %s233 = smul.addr %s232, 2
          %s234 = scalar_lea.vmem %s0, %s233
        $region16: #{tpu_custom_call.1} parent=11 // pred_fallthru
          _
        // Predicated region
        $region17: #{tpu_custom_call.1} parent=11 // pred_check
          %p235 = pneg %p103
        $region18: #{tpu_custom_call.1} parent=11 // pred_check_branch
          %237 = sbr.rel (%p235) target = $region20
        $region19: #{tpu_custom_call.1} parent=11 // pred_region
          %s239 = ssub.s32 256, 256
          %240 = vsyncadd [#allocation5], %s239
          %s241 = sshll.u32 [#allocation4], 4
          %s242 = int_to_ptr.vmem [resolvable:$true] %s241
          %247 = dma.hbm_to_vmem [thread:$0]  %s2, 256, %s242, [#allocation5], 64, 64, 4
        $region20: #{tpu_custom_call.1} parent=11 // pred_fallthru
          _
        // Predicated region
        $region21: #{tpu_custom_call.1} parent=11 // pred_check
          %p248 = pneg %p124
        $region22: #{tpu_custom_call.1} parent=11 // pred_check_branch
          %250 = sbr.rel (%p248) target = $region24
        $region23: #{tpu_custom_call.1} parent=11 // pred_region
          %s252 = ssub.s32 256, 256
          %253 = vsyncadd [#allocation8], %s252
          %s254 = sshll.u32 [#allocation7], 4
          %s255 = int_to_ptr.vmem [resolvable:$true] %s254
          %260 = dma.hbm_to_vmem [thread:$0]  %s3, 256, %s255, [#allocation8], 64, 64, 4
        $region24: #{tpu_custom_call.1} parent=11 // pred_fallthru
          _
        // Predicated region
        $region25: #{tpu_custom_call.1} parent=11 // pred_check
          %p261 = pneg %p145
        $region26: #{tpu_custom_call.1} parent=11 // pred_check_branch
          %263 = sbr.rel (%p261) target = $region28
        $region27: #{tpu_custom_call.1} parent=11 // pred_region
          _
        $region28: #{tpu_custom_call.1} parent=11 // pred_fallthru
          _
        // Predicated region
        $region29: #{tpu_custom_call.1} parent=11 // pred_check
          %p264 = pneg %p166
        $region30: #{tpu_custom_call.1} parent=11 // pred_check_branch
          %266 = sbr.rel (%p264) target = $region32
        $region31: #{tpu_custom_call.1} parent=11 // pred_region
          _
        $region32: #{tpu_custom_call.1} parent=11 // pred_fallthru
          _
        // Predicated region
        $region33: #{tpu_custom_call.1} parent=11 // pred_check
          %p267 = pneg %p187
        $region34: #{tpu_custom_call.1} parent=11 // pred_check_branch
          %269 = sbr.rel (%p267) target = $region36
        $region35: #{tpu_custom_call.1} parent=11 // pred_region
          _
        $region36: #{tpu_custom_call.1} parent=11 // pred_fallthru
          _
      $region12: #{tpu_custom_call.1} parent=5 // pred_fallthru
        _
      %p270 = scmp.lt.s32.totalorder %s16, 2
      // Predicated region
      $region37: #{tpu_custom_call.1} parent=5 // pred_check
        %p271 = pneg %p270
      $region38: #{tpu_custom_call.1} parent=5 // pred_check_branch
        %273 = sbr.rel (%p271) target = $region40
      $region39: #{tpu_custom_call.1} parent=5 // pred_region
        // Predicated region
        $region41: #{tpu_custom_call.1} parent=39 // pred_check
          %p274 = pneg %p76
        $region42: #{tpu_custom_call.1} parent=39 // pred_check_branch
          %276 = sbr.rel (%p274) target = $region44
        $region43: #{tpu_custom_call.1} parent=39 // pred_region
          %s277 = sand.u32 %s66, 1
          %s278 = sand.u32 %s66, 1
          %s279 = smul.addr %s278, 16
          %s280 = scalar_lea.vmem [#allocation3], %s279
          %s281 = smul.u32 2, %s23
          %s282 = smul.addr %s281, 2
          %s283 = sadd.s32 %s24, %s282
          %s284 = smul.addr %s283, 8
          %s285 = scalar_lea.vmem %s1, %s284
          // Predicated region
          $region45: #{tpu_custom_call.1} parent=43 // pred_check
            _
          $region46: #{tpu_custom_call.1} parent=43 // pred_check_branch
            %287 = sbr.rel (0) target = $region48
          $region47: #{tpu_custom_call.1} parent=43 // pred_region
            // Predicated region
            $region49: #{tpu_custom_call.1} parent=47 // pred_check
              _
            $region50: #{tpu_custom_call.1} parent=47 // pred_check_branch
              %289 = sbr.rel (0) target = $region52
            $region51: #{tpu_custom_call.1} parent=47 // pred_region
              // Predicated region
              $region64: #{tpu_custom_call.1} parent=51 // pred_check
                _
              $region65: #{tpu_custom_call.1} parent=51 // pred_check_branch
                %306 = sbr.rel (0) target = $region67
              $region66: #{tpu_custom_call.1} parent=51 // pred_region
                loop: start=0, step=1, limit=1
                $region68: #{tpu_custom_call.1} parent=66 // loop_pre_header
                  _
                $region69: #{tpu_custom_call.1} parent=66 // loop_header
                  %s308 = sphi 0, %s312
                  %p309 = scmp.ge.s32.totalorder %s308, 1
                  %s313 = sphi %s285, %s285
                  %s314 = sphi %s280, %s280
                $region70: #{tpu_custom_call.1} parent=66 // loop_header_branch
                  %311 = sbr.rel (%p309) target = $region74
                $region71: #{tpu_custom_call.1} parent=66 // loop_body
                  %v315 = vld [vmem:[%s313] sm:$0xff]
                  %316 = vst [vmem:[%s314] sm:$0xff] %v315
                  %v317 = vld [vmem:[%s313 + $0x10] sm:$0xff]
                  %318 = vst [vmem:[%s314 + $0x8] sm:$0xff] %v317
                $region72: #{tpu_custom_call.1} parent=66 // loop_footer
                  %s312 = sadd.s32 1, %s308
                $region73: #{tpu_custom_call.1} parent=66 // loop_footer_branch
                  %307 = sbr.rel target = $region69
                $region74: #{tpu_custom_call.1} parent=66 // loop_exit
                  _
              $region67: #{tpu_custom_call.1} parent=51 // pred_fallthru
                _
              // Predicated region
              $region75: #{tpu_custom_call.1} parent=51 // pred_check
                _
              $region76: #{tpu_custom_call.1} parent=51 // pred_check_branch
                %320 = sbr.rel target = $region78
              $region77: #{tpu_custom_call.1} parent=51 // pred_region
                _
              $region78: #{tpu_custom_call.1} parent=51 // pred_fallthru
                _
            $region52: #{tpu_custom_call.1} parent=47 // pred_fallthru
              _
            // Predicated region
            $region53: #{tpu_custom_call.1} parent=47 // pred_check
              _
            $region54: #{tpu_custom_call.1} parent=47 // pred_check_branch
              %291 = sbr.rel target = $region56
            $region55: #{tpu_custom_call.1} parent=47 // pred_region
              loop: start=0, step=1, limit=1
              $region57: #{tpu_custom_call.1} parent=55 // loop_pre_header
                _
              $region58: #{tpu_custom_call.1} parent=55 // loop_header
                %s294 = sphi 0, %s298
                %p295 = scmp.ge.s32.totalorder %s294, 1
                %s299 = sphi %s285, %s285
                %s300 = sphi %s280, %s280
              $region59: #{tpu_custom_call.1} parent=55 // loop_header_branch
                %297 = sbr.rel (%p295) target = $region63
              $region60: #{tpu_custom_call.1} parent=55 // loop_body
                %v301 = vld [vmem:[%s299] sm:$0xff]
                %302 = vst [vmem:[%s300] sm:$0xff] %v301
                %v303 = vld [vmem:[%s299 + $0x10] sm:$0xff]
                %304 = vst [vmem:[%s300 + $0x8] sm:$0xff] %v303
              $region61: #{tpu_custom_call.1} parent=55 // loop_footer
                %s298 = sadd.s32 1, %s294
              $region62: #{tpu_custom_call.1} parent=55 // loop_footer_branch
                %293 = sbr.rel target = $region58
              $region63: #{tpu_custom_call.1} parent=55 // loop_exit
                _
            $region56: #{tpu_custom_call.1} parent=47 // pred_fallthru
              _
          $region48: #{tpu_custom_call.1} parent=43 // pred_fallthru
            _
          %321 = vnop
        $region44: #{tpu_custom_call.1} parent=39 // pred_fallthru
          _
      $region40: #{tpu_custom_call.1} parent=5 // pred_fallthru
        _
      %p322 = scmp.le.s32.totalorder 1, %s16
      %p323 = scmp.lt.s32.totalorder %s16, 3
      %p324 = pnand %p322, %p323
      %p325 = pneg %p324
      // Predicated region
      $region79: #{tpu_custom_call.1} parent=5 // pred_check
        _
      $region80: #{tpu_custom_call.1} parent=5 // pred_check_branch
        %327 = sbr.rel (%p324) target = $region82
      $region81: #{tpu_custom_call.1} parent=5 // pred_region
        %s328 = ssub.s32 %s16, 1
        %s329 = sand.u32 %s69, 1
        %s330 = sand.u32 %s69, 1
        %s331 = smul.addr %s330, 16
        %s332 = scalar_lea.vmem [#allocation3], %s331
        // Predicated region
        $region83: #{tpu_custom_call.1} parent=81 // pred_check
          %p333 = pneg %p82
        $region84: #{tpu_custom_call.1} parent=81 // pred_check_branch
          %335 = sbr.rel (%p333) target = $region86
        $region85: #{tpu_custom_call.1} parent=81 // pred_region
          _
        $region86: #{tpu_custom_call.1} parent=81 // pred_fallthru
          _
        // Predicated region
        $region87: #{tpu_custom_call.1} parent=81 // pred_check
          %p336 = pneg %p103
        $region88: #{tpu_custom_call.1} parent=81 // pred_check_branch
          %338 = sbr.rel (%p336) target = $region90
        $region89: #{tpu_custom_call.1} parent=81 // pred_region
          %339 = dma.done [#allocation5], 256
        $region90: #{tpu_custom_call.1} parent=81 // pred_fallthru
          _
        // Predicated region
        $region91: #{tpu_custom_call.1} parent=81 // pred_check
          %p340 = pneg %p124
        $region92: #{tpu_custom_call.1} parent=81 // pred_check_branch
          %342 = sbr.rel (%p340) target = $region94
        $region93: #{tpu_custom_call.1} parent=81 // pred_region
          %343 = dma.done [#allocation8], 256
        $region94: #{tpu_custom_call.1} parent=81 // pred_fallthru
          _
        %p344 = scmp.lt.s32.totalorder %s25, 0
        %s345 = scalar_select %p344, %s25, 0
        %s346 = smul.addr %s345, 2
        %s347 = scalar_lea.vmem %s0, %s346
        %p348 = pneg %p54
        %p349 = pneg %p51
        %s350 = sand.u32 %s69, 1
        %s351 = sand.u32 %s69, 1
        %s352 = smul.addr %s351, 16
        %s353 = scalar_lea.vmem [#allocation3], %s352
        %p354 = pneg %p82
        %p355 = pneg %p79
        %p356 = pneg %p103
        %p357 = pneg %p100
        %p358 = pneg %p124
        %p359 = pneg %p121
        %p360 = pneg %p145
        %p361 = pneg %p142
        %p362 = pneg %p166
        %p363 = pneg %p163
        %p364 = pneg %p187
        %p365 = pneg %p184
        %p366 = pneg %p213
        %p367 = pneg %p210
        %p368 = scmp.lt.s32.totalorder %s25, 0
        %s369 = scalar_select %p368, %s25, 0
        %s370 = smul.addr %s369, 2
        %s371 = scalar_lea.vmem %s0, %s370
        %s372 = smul.u32 2, %s25
        %p374 = scmp.eq.s32.totalorder %s26, 0
        // Predicated region
        $region95: #{tpu_custom_call.1} parent=81 // pred_check
          %p375 = pneg %p374
        $region96: #{tpu_custom_call.1} parent=81 // pred_check_branch
          %377 = sbr.rel (%p375) target = $region98
        $region97: #{tpu_custom_call.1} parent=81 // pred_region
          %vm378 = vcmask 254976
          %379 = vst.msk [vmem:[#allocation2] sm:$0x3] %vm378, 0.0
        $region98: #{tpu_custom_call.1} parent=81 // pred_fallthru
          _
        %v380 = vld [vmem:[%s332] sm:$0xff]
        %v381 = vld [vmem:[%s332 + $0x8] sm:$0xff]
        %v382 = vlaneseq
        %v383 = vshrl.u32 %v382, 7
        %s384 = smul.u32 %s26, 8
        %s385 = ssub.s32 10, %s384
        %v386 = vstv %s385
        %vm387 = vcmp.lt.s32.totalorder %v383, %v386
        %v388 = vsel %vm387, 1, 0
        %vm389 = vcmp.eq.s32.totalorder %v388, 1
        %v390 = vsel %vm389, %v380, 0.0
        %v391 = vsel %vm389, %v381, 0.0
        %v392 = vld [vmem:[#allocation2] sm:$0x3]
        %vm393 = vcmask 261120
        %v394 = vsel %vm393, %v390, 0.0
        %v395 = vrot.slane %v394, 4
        %v396 = vadd.f32 %v394, %v395
        %v397 = vrot.slane %v396, 2
        %v398 = vadd.f32 %v396, %v397
        %v399 = vrot.slane %v398, 1
        %v400 = vadd.f32 %v398, %v399
        %v401 = vsel %vm393, %v391, 0.0
        %v402 = vrot.slane %v401, 4
        %v403 = vadd.f32 %v401, %v402
        %v404 = vrot.slane %v403, 2
        %v405 = vadd.f32 %v403, %v404
        %v406 = vrot.slane %v405, 1
        %v407 = vadd.f32 %v405, %v406
        %vm410 = vcmask 1041409
        %v411 = vsel %vm410, %v407, %v400
        %v413 = vadd.f32 %v392, %v411
        %vm414 = vcmask 254976
        %415 = vst.msk [vmem:[#allocation2] sm:$0x3] %vm414, %v413
        %p416 = scmp.eq.s32.totalorder %s26, 1
        // Predicated region
        $region99: #{tpu_custom_call.1} parent=81 // pred_check
          %p417 = pneg %p416
        $region100: #{tpu_custom_call.1} parent=81 // pred_check_branch
          %419 = sbr.rel (%p417) target = $region102
        $region101: #{tpu_custom_call.1} parent=81 // pred_region
          %v420 = vld [vmem:[%s371] sm:$0x3]
          %v421 = vpack.c.bf16 %v420, %v420
          %v422 = vld [vmem:[#allocation2] sm:$0x3]
          %v423 = vpack.c.bf16 %v422, %v422
          %v424 = vld [vmem:[#allocation4] sm:$0xf]
          %v425 = vld [vmem:[#allocation4 + $0x4] sm:$0xf]
          %v426 = vld [vmem:[#allocation4 + $0x8] sm:$0xf]
          %v427 = vld [vmem:[#allocation4 + $0xc] sm:$0xf]
          %v428 = vld [vmem:[#allocation7] sm:$0xf]
          %v429 = vld [vmem:[#allocation7 + $0x4] sm:$0xf]
          %v430 = vld [vmem:[#allocation7 + $0x8] sm:$0xf]
          %v431 = vld [vmem:[#allocation7 + $0xc] sm:$0xf]
          %v436 = vunpack.c.l.b16 %v428
          %v437 = vunpack.c.l.b16 %v429
          %v438 = vunpack.c.l.b16 %v430
          %v439 = vunpack.c.l.b16 %v431
          %v440 = vpack.c.b16 %v437, %v436
          %v441 = vpack.c.b16 %v439, %v438
          %v445 = vsel %vm393, %v423, 0
          %447 = vmatprep.subr.bf16.mxu0 0
          %448 = vmatpush1.bf16.msra.mxu0 %v440
          %449 = vmatprep.subr.bf16.mxu0 0
          %450 = vmatpush1.bf16.msra.mxu0 %v441
          %451 = vmatprep.subr.bf16.mxu0 0
          %452 = vmatpush1.bf16.msra.mxu0 0
          %453 = vmatprep.subr.bf16.mxu0 0
          %454 = vmatpush1.bf16.msra.mxu0 0
          %455 = vmatprep.subr.bf16.mxu0 0
          %456 = vmatpush1.bf16.msra.mxu0 0
          %457 = vmatprep.subr.bf16.mxu0 0
          %458 = vmatpush1.bf16.msra.mxu0 0
          %459 = vmatprep.subr.bf16.mxu0 0
          %460 = vmatpush1.bf16.msra.mxu0 0
          %461 = vmatprep.subr.bf16.mxu0 0
          %462 = vmatpush1.bf16.msra.mxu0 0
          %463 = vmatprep.subr.bf16.mxu0 0
          %464 = vmatpush1.bf16.msra.mxu0 0
          %465 = vmatprep.subr.bf16.mxu0 0
          %466 = vmatpush1.bf16.msra.mxu0 0
          %467 = vmatprep.subr.bf16.mxu0 0
          %468 = vmatpush1.bf16.msra.mxu0 0
          %469 = vmatprep.subr.bf16.mxu0 0
          %470 = vmatpush1.bf16.msra.mxu0 0
          %471 = vmatprep.subr.bf16.mxu0 0
          %472 = vmatpush1.bf16.msra.mxu0 0
          %473 = vmatprep.subr.bf16.mxu0 0
          %474 = vmatpush1.bf16.msra.mxu0 0
          %475 = vmatprep.subr.bf16.mxu0 0
          %476 = vmatpush1.bf16.msra.mxu0 0
          %477 = vmatprep.subr.bf16.mxu0 0
          %478 = vmatpush1.bf16.msra.mxu0 0
          %479 = vmatprep.mubr.bf16.mxu0 0
          %480 = vmatmul.mubr.bf16.gmra.mrb[0].mxu0 %v445
          %v481 = vpop.f32.mrb[0].mxu0
          %v482 = vadd.f32 0.0, %v481
          %v483 = vpop.f32.mrb[0].mxu0
          %v484 = vpop.f32.mrb[0].mxu0
          %v485 = vpop.f32.mrb[0].mxu0
          %486 = vdwg.mxu0
          %v491 = vunpack.c.l.b16 %v424
          %v492 = vunpack.c.l.b16 %v425
          %v493 = vunpack.c.l.b16 %v426
          %v494 = vunpack.c.l.b16 %v427
          %v495 = vpack.c.b16 %v492, %v491
          %v496 = vpack.c.b16 %v494, %v493
          %v500 = vsel %vm393, %v421, 0
          %502 = vmatprep.subr.bf16.mxu0 0
          %503 = vmatpush1.bf16.msra.mxu0 %v495
          %504 = vmatprep.subr.bf16.mxu0 0
          %505 = vmatpush1.bf16.msra.mxu0 %v496
          %506 = vmatprep.subr.bf16.mxu0 0
          %507 = vmatpush1.bf16.msra.mxu0 0
          %508 = vmatprep.subr.bf16.mxu0 0
          %509 = vmatpush1.bf16.msra.mxu0 0
          %510 = vmatprep.subr.bf16.mxu0 0
          %511 = vmatpush1.bf16.msra.mxu0 0
          %512 = vmatprep.subr.bf16.mxu0 0
          %513 = vmatpush1.bf16.msra.mxu0 0
          %514 = vmatprep.subr.bf16.mxu0 0
          %515 = vmatpush1.bf16.msra.mxu0 0
          %516 = vmatprep.subr.bf16.mxu0 0
          %517 = vmatpush1.bf16.msra.mxu0 0
          %518 = vmatprep.subr.bf16.mxu0 0
          %519 = vmatpush1.bf16.msra.mxu0 0
          %520 = vmatprep.subr.bf16.mxu0 0
          %521 = vmatpush1.bf16.msra.mxu0 0
          %522 = vmatprep.subr.bf16.mxu0 0
          %523 = vmatpush1.bf16.msra.mxu0 0
          %524 = vmatprep.subr.bf16.mxu0 0
          %525 = vmatpush1.bf16.msra.mxu0 0
          %526 = vmatprep.subr.bf16.mxu0 0
          %527 = vmatpush1.bf16.msra.mxu0 0
          %528 = vmatprep.subr.bf16.mxu0 0
          %529 = vmatpush1.bf16.msra.mxu0 0
          %530 = vmatprep.subr.bf16.mxu0 0
          %531 = vmatpush1.bf16.msra.mxu0 0
          %532 = vmatprep.subr.bf16.mxu0 0
          %533 = vmatpush1.bf16.msra.mxu0 0
          %534 = vmatprep.mubr.bf16.mxu0 0
          %535 = vmatmul.mubr.bf16.gmra.mrb[0].mxu0 %v500
          %v536 = vpop.f32.mrb[0].mxu0
          %v537 = vadd.f32 %v482, %v536
          %v538 = vpop.f32.mrb[0].mxu0
          %v539 = vpop.f32.mrb[0].mxu0
          %v540 = vpop.f32.mrb[0].mxu0
          %541 = vdwg.mxu0
          %v542 = vld [vmem:[%s4] sm:$0x1]
          %v544 = vlaneseq
          %v545 = vshrl.u32 %v544, 7
          %v546 = vsub.s32 0, %v545
          %v547 = vrot.slane %v542, %v546
          %v549 = vadd.f32 %v537, %v547
          %v550 = vmax.f32 %v549, 0.0
          %v551 = vpack.c.bf16 %v550, %v550
          %v552 = vld [vmem:[%s5] sm:$0xf]
          %v553 = vld [vmem:[%s5 + $0x4] sm:$0xf]
          %v554 = vld [vmem:[%s5 + $0x8] sm:$0xf]
          %v555 = vld [vmem:[%s5 + $0xc] sm:$0xf]
          %v556 = vld [vmem:[%s5 + $0x10] sm:$0xf]
          %v557 = vld [vmem:[%s5 + $0x14] sm:$0xf]
          %v558 = vld [vmem:[%s5 + $0x18] sm:$0xf]
          %v559 = vld [vmem:[%s5 + $0x1c] sm:$0xf]
          %v560 = vld [vmem:[%s5 + $0x20] sm:$0xf]
          %v561 = vld [vmem:[%s5 + $0x24] sm:$0xf]
          %v562 = vld [vmem:[%s5 + $0x28] sm:$0xf]
          %v563 = vld [vmem:[%s5 + $0x2c] sm:$0xf]
          %v564 = vld [vmem:[%s5 + $0x30] sm:$0xf]
          %v565 = vld [vmem:[%s5 + $0x34] sm:$0xf]
          %v566 = vld [vmem:[%s5 + $0x38] sm:$0xf]
          %v567 = vld [vmem:[%s5 + $0x3c] sm:$0xf]
          %v568 = vld [vmem:[%s6] sm:$0x1]
          %v570 = vlaneseq
          %v571 = vshrl.u32 %v570, 7
          %v572 = vsub.s32 0, %v571
          %v573 = vrot.slane %v568, %v572
          %v591 = vunpack.c.l.b16 %v552
          %v592 = vunpack.c.l.b16 %v553
          %v593 = vunpack.c.l.b16 %v554
          %v594 = vunpack.c.l.b16 %v555
          %v595 = vunpack.c.l.b16 %v556
          %v596 = vunpack.c.l.b16 %v557
          %v597 = vunpack.c.l.b16 %v558
          %v598 = vunpack.c.l.b16 %v559
          %v599 = vunpack.c.l.b16 %v560
          %v600 = vunpack.c.l.b16 %v561
          %v601 = vunpack.c.l.b16 %v562
          %v602 = vunpack.c.l.b16 %v563
          %v603 = vunpack.c.l.b16 %v564
          %v604 = vunpack.c.l.b16 %v565
          %v605 = vunpack.c.l.b16 %v566
          %v606 = vunpack.c.l.b16 %v567
          %v607 = vpack.c.b16 %v592, %v591
          %v608 = vpack.c.b16 %v594, %v593
          %v609 = vpack.c.b16 %v596, %v595
          %v610 = vpack.c.b16 %v598, %v597
          %v611 = vpack.c.b16 %v600, %v599
          %v612 = vpack.c.b16 %v602, %v601
          %v613 = vpack.c.b16 %v604, %v603
          %v614 = vpack.c.b16 %v606, %v605
          %623 = vmatprep.subr.bf16.mxu0 0
          %624 = vmatpush1.bf16.msra.mxu0 %v607
          %625 = vmatprep.subr.bf16.mxu0 0
          %626 = vmatpush1.bf16.msra.mxu0 %v608
          %627 = vmatprep.subr.bf16.mxu0 0
          %628 = vmatpush1.bf16.msra.mxu0 %v609
          %629 = vmatprep.subr.bf16.mxu0 0
          %630 = vmatpush1.bf16.msra.mxu0 %v610
          %631 = vmatprep.subr.bf16.mxu0 0
          %632 = vmatpush1.bf16.msra.mxu0 %v611
          %633 = vmatprep.subr.bf16.mxu0 0
          %634 = vmatpush1.bf16.msra.mxu0 %v612
          %635 = vmatprep.subr.bf16.mxu0 0
          %636 = vmatpush1.bf16.msra.mxu0 %v613
          %637 = vmatprep.subr.bf16.mxu0 0
          %638 = vmatpush1.bf16.msra.mxu0 %v614
          %639 = vmatprep.subr.bf16.mxu0 0
          %640 = vmatpush1.bf16.msra.mxu0 0
          %641 = vmatprep.subr.bf16.mxu0 0
          %642 = vmatpush1.bf16.msra.mxu0 0
          %643 = vmatprep.subr.bf16.mxu0 0
          %644 = vmatpush1.bf16.msra.mxu0 0
          %645 = vmatprep.subr.bf16.mxu0 0
          %646 = vmatpush1.bf16.msra.mxu0 0
          %647 = vmatprep.subr.bf16.mxu0 0
          %648 = vmatpush1.bf16.msra.mxu0 0
          %649 = vmatprep.subr.bf16.mxu0 0
          %650 = vmatpush1.bf16.msra.mxu0 0
          %651 = vmatprep.subr.bf16.mxu0 0
          %652 = vmatpush1.bf16.msra.mxu0 0
          %653 = vmatprep.subr.bf16.mxu0 0
          %654 = vmatpush1.bf16.msra.mxu0 0
          %655 = vmatprep.mubr.bf16.mxu0 0
          %656 = vmatmul.mubr.bf16.gmra.mrb[0].mxu0 %v551
          %v657 = vpop.f32.mrb[0].mxu0
          %v658 = vadd.f32 %v573, %v657
          %v659 = vpop.f32.mrb[0].mxu0
          %v660 = vpop.f32.mrb[0].mxu0
          %v661 = vpop.f32.mrb[0].mxu0
          %662 = vdwg.mxu0
          %663 = vst [vmem:[#allocation9] sm:$0x3] %v658
        $region102: #{tpu_custom_call.1} parent=81 // pred_fallthru
          _
        // Predicated region
        $region103: #{tpu_custom_call.1} parent=81 // pred_check
          %p664 = pneg %p210
        $region104: #{tpu_custom_call.1} parent=81 // pred_check_branch
          %666 = sbr.rel (%p664) target = $region106
        $region105: #{tpu_custom_call.1} parent=81 // pred_region
          %s668 = ssub.s32 32, 32
          %669 = vsyncadd [#allocation6], %s668
          %s670 = smul.addr %s25, 32
          %s671 = scalar_lea.hbm %s7, %s670
          %s673 = sshll.u32 [#allocation9], 4
          %s674 = int_to_ptr.vmem [resolvable:$true] %s673
          %676 = dma.vmem_to_hbm [thread:$0]  %s674, 32, %s671, [#allocation6]
        $region106: #{tpu_custom_call.1} parent=81 // pred_fallthru
          _
        // Predicated region
        $region107: #{tpu_custom_call.1} parent=81 // pred_check
          %p677 = pneg %p210
        $region108: #{tpu_custom_call.1} parent=81 // pred_check_branch
          %679 = sbr.rel (%p677) target = $region110
        $region109: #{tpu_custom_call.1} parent=81 // pred_region
          %680 = dma.done [#allocation6], 32
        $region110: #{tpu_custom_call.1} parent=81 // pred_fallthru
          _
      $region82: #{tpu_custom_call.1} parent=5 // pred_fallthru
        _
      %p681 = scmp.le.s32.totalorder 2, %s16
      // Predicated region
      $region111: #{tpu_custom_call.1} parent=5 // pred_check
        %p682 = pneg %p681
      $region112: #{tpu_custom_call.1} parent=5 // pred_check_branch
        %684 = sbr.rel (%p682) target = $region114
      $region113: #{tpu_custom_call.1} parent=5 // pred_region
        %s685 = ssub.s32 %s16, 2
      $region114: #{tpu_custom_call.1} parent=5 // pred_fallthru
        _
    $region6: #{tpu_custom_call.1} parent=1 // loop_footer
      %s20 = sadd.s32 1, %s16
    $region7: #{tpu_custom_call.1} parent=1 // loop_footer_branch
      %15 = sbr.rel target = $region3
    $region8: #{tpu_custom_call.1} parent=1 // loop_exit
      _
    %686 = vsyncpa [#allocation5], 1
    %s687 = scalar_lea.sflag [#allocation5], 1
    %688 = vsyncpa %s687, 1
    %689 = vsyncpa [#allocation8], 1
    %690 = vsyncpa [#allocation6], 1
    %s691 = scalar_lea.sflag [#allocation6], 1
    %692 = vsyncpa %s691, 1

</llo_original>
